<compile_context>
chip_gen: v7x
topology: tpu7x:2x2x1
jax: 0.10.0
libtpu: 0.0.40
codegen_flags: <defaults>
</compile_context>

<pallas_src>
import functools

import jax
import jax.numpy as jnp
from jax import lax
from jax.experimental import pallas as pl
from jax.experimental.pallas import tpu as pltpu


def _round_up(x, m):
    return (x + m - 1) // m * m


def cnn_kernel(tok_ref, table_ref, wcf_ref, bc_ref, wl_ref, bl_ref, out_ref, *,
               window_size, conv_len, chunk_b, n_chunks):
    # tok_ref  : (Bt, T)    int32  token ids for this batch tile
    # table_ref: (Vpad, E)  bf16   embedding table (rows >= vocab are zero)
    # wcf_ref  : (W*E, F)   bf16   conv weight, tap-major flattened along K
    # bc_ref   : (1, F)     f32    conv bias
    # wl_ref   : (F, O)     bf16   linear weight (transposed)
    # bl_ref   : (1, O)     f32    linear bias
    # out_ref  : (Bt, O)    f32    logits for this batch tile
    Bt, T = tok_ref.shape
    Vpad, E = table_ref.shape
    F = wcf_ref.shape[1]
    n_c = chunk_b * T
    neg = jnp.finfo(jnp.float32).min

    # Small time-validity mask, broadcast inside jnp.where (no (Bt, T, F) iota).
    t_valid = jax.lax.broadcasted_iota(jnp.int32, (1, T, 1), 1) < conv_len

    def chunk_body(i, carry):
        b0 = pl.multiple_of(i * chunk_b, chunk_b)

        # ---- Embedding gather: one-hot @ table on the MXU --------------------
        tok = tok_ref[pl.ds(b0, chunk_b), :]                          # (cB, T) int32
        ids = tok.reshape(chunk_b, T, 1)
        v_iota = jax.lax.broadcasted_iota(jnp.int32, (1, 1, Vpad), 2)
        onehot = (ids == v_iota).astype(jnp.bfloat16).reshape(n_c, Vpad)
        emb = jnp.dot(onehot, table_ref[...],
                      preferred_element_type=jnp.float32)             # (n_c, E) f32

        # ---- Conv1d (valid, stride 1) as ONE matmul with K = W*E -------------
        # Tap w of row n needs emb[n + w]; build that with sublane rolls (XLU slot,
        # wrap-around rows are masked before the max) and concatenate along lanes.
        parts = [emb]
        for w in range(1, window_size):
            parts.append(pltpu.roll(emb, shift=(n_c - w) % n_c, axis=0))
        cat = jnp.concatenate(parts, axis=1).astype(jnp.bfloat16)      # (n_c, W*E)
        conv = jnp.dot(cat, wcf_ref[...],
                       preferred_element_type=jnp.float32)             # (n_c, F)

        # ---- Masked max over time, bias + ReLU (bias is time-constant) -------
        conv3 = conv.reshape(chunk_b, T, F)
        pooled = jnp.max(jnp.where(t_valid, conv3, neg), axis=1)       # (cB, F)
        pooled = jnp.maximum(pooled + bc_ref[...], 0.0)

        # ---- Final linear -----------------------------------------------------
        out = jnp.dot(pooled.astype(jnp.bfloat16), wl_ref[...],
                      preferred_element_type=jnp.float32) + bl_ref[...]
        out_ref[pl.ds(b0, chunk_b), :] = out.astype(out_ref.dtype)
        return carry

    lax.fori_loop(0, n_chunks, chunk_body, None, unroll=True)


def cnn_forward(inputs, emb_table, conv_w, conv_b, lin_w, lin_b, *,
                window_size, block_batch=1024):
    """inputs: (B, T) int32 token ids. Returns (B, num_tags) float32 logits."""
    B, T = inputs.shape
    V, E = emb_table.shape
    F = conv_w.shape[0]
    O = lin_w.shape[0]
    assert T >= window_size, "sequence must be at least window_size"
    L = T - window_size + 1

    Vpad = _round_up(V, 128)                     # one-hot lane dim (small-vocab path)

    # Batch tile: multiple of 8; prefer >= 2 grid steps when the batch allows it
    # (keeps both TensorCores busy on v7x and lets the pipeline overlap steps).
    b8 = _round_up(B, 8)
    Bt = min(_round_up(block_batch, 8), b8)
    if Bt == b8 and b8 >= 16:
        Bt = _round_up((b8 + 1) // 2, 8)
    B_pad = _round_up(B, Bt)

    # Sequences per inner-loop chunk: keeps f32 conv/mask intermediates small.
    chunk_b = next(c for c in (64, 32, 16, 8) if Bt % c == 0)
    n_chunks = Bt // chunk_b

    tokens = inputs.astype(jnp.int32)
    if B_pad != B:
        tokens = jnp.pad(tokens, ((0, B_pad - B), (0, 0)))            # pad with id 0

    # Parameter prep (plain JAX glue).
    table = jnp.zeros((Vpad, E), jnp.bfloat16).at[:V, :].set(
        emb_table.astype(jnp.bfloat16))                               # (Vpad, E)
    wcf = jnp.transpose(conv_w, (2, 1, 0)).reshape(window_size * E, F)
    wcf = wcf.astype(jnp.bfloat16)                                    # (W*E, F)
    bc = conv_b.reshape(1, F).astype(jnp.float32)                     # (1, F)
    wl = lin_w.T.astype(jnp.bfloat16)                                 # (F, O)
    bl = lin_b.reshape(1, O).astype(jnp.float32)                      # (1, O)

    kernel = functools.partial(cnn_kernel, window_size=window_size, conv_len=L,
                               chunk_b=chunk_b, n_chunks=n_chunks)

    # Advisory cost: actual MXU work (one-hot gather + conv over all T rows + linear).
    flops = (2 * B_pad * T * Vpad * E
             + 2 * B_pad * T * window_size * E * F
             + 2 * B_pad * F * O)
    bytes_accessed = (tokens.size * 4 + table.size * 2 + wcf.size * 2
                      + bc.size * 4 + wl.size * 2 + bl.size * 4 + B_pad * O * 4)
    cost = pl.CostEstimate(flops=flops, transcendentals=0,
                           bytes_accessed=bytes_accessed)

    out = pl.pallas_call(
        kernel,
        out_shape=jax.ShapeDtypeStruct((B_pad, O), jnp.float32),
        grid_spec=pltpu.PrefetchScalarGridSpec(
            num_scalar_prefetch=0,
            grid=(B_pad // Bt,),
            in_specs=[
                pl.BlockSpec((Bt, T), lambda b: (b, 0)),              # token ids
                pl.BlockSpec((Vpad, E), lambda b: (0, 0)),            # emb table
                pl.BlockSpec((window_size * E, F), lambda b: (0, 0)), # conv weight
                pl.BlockSpec((1, F), lambda b: (0, 0)),               # conv bias
                pl.BlockSpec((F, O), lambda b: (0, 0)),               # linear weight
                pl.BlockSpec((1, O), lambda b: (0, 0)),               # linear bias
            ],
            out_specs=pl.BlockSpec((Bt, O), lambda b: (b, 0)),
        ),
        compiler_params=pltpu.CompilerParams(
            dimension_semantics=("parallel",),
        ),
        cost_estimate=cost,
    )(tokens, table, wcf, bc, wl, bl)

    return out[:B, :]


def reference_forward(inputs, emb_table, conv_w, conv_b, lin_w, lin_b, *, window_size):
    """Pure-JAX f32 reference mirroring the PyTorch forward, for a sanity check."""
    emb = jnp.take(emb_table, inputs, axis=0)                 # (B, T, E)
    B, T, E = emb.shape
    F = conv_w.shape[0]
    L = T - window_size + 1
    conv = jnp.zeros((B, L, F), jnp.float32)
    for w in range(window_size):
        conv = conv + jnp.einsum("bte,fe->btf", emb[:, w:w + L, :], conv_w[:, :, w])
    conv = conv + conv_b[None, None, :]
    pooled = jnp.max(conv, axis=1)                            # max over time
    pooled = jnp.maximum(pooled, 0.0)
    return pooled @ lin_w.T + lin_b[None, :]


if __name__ == "__main__":
    # Small, deterministic configuration consistent with the module's __init__.
    vocab_size, embedding_dim, num_filters, window_size, num_tags = 100, 32, 64, 3, 8
    batch, seq_len = 2, 16

    key = jax.random.PRNGKey(0)
    k_emb, k_cw, k_cb, k_lw, k_tok = jax.random.split(key, 5)

    # nn.init.uniform_(embedding.weight, -0.25, 0.25)
    emb_table = jax.random.uniform(
        k_emb, (vocab_size, embedding_dim), jnp.float32, minval=-0.25, maxval=0.25)

    # Conv1d default init ~ U(-1/sqrt(fan_in), 1/sqrt(fan_in)), fan_in = E * W
    fan_in_conv = embedding_dim * window_size
    cbound = 1.0 / (fan_in_conv ** 0.5)
    conv_w = jax.random.uniform(
        k_cw, (num_filters, embedding_dim, window_size), jnp.float32,
        minval=-cbound, maxval=cbound)
    conv_b = jax.random.uniform(
        k_cb, (num_filters,), jnp.float32, minval=-cbound, maxval=cbound)

    # Xavier-uniform linear weight; bias zero (deterministic synthetic init).
    xbound = (6.0 / (num_filters + num_tags)) ** 0.5
    lin_w = jax.random.uniform(
        k_lw, (num_tags, num_filters), jnp.float32, minval=-xbound, maxval=xbound)
    lin_b = jnp.zeros((num_tags,), jnp.float32)

    tokens = jax.random.randint(k_tok, (batch, seq_len), 0, vocab_size, jnp.int32)

    out = cnn_forward(tokens, emb_table, conv_w, conv_b, lin_w, lin_b,
                      window_size=window_size)
    out = jax.block_until_ready(out)

    ref = reference_forward(tokens, emb_table, conv_w, conv_b, lin_w, lin_b,
                            window_size=window_size)
    assert out.shape == (batch, num_tags)
    # bf16 table/weights (f32 accumulate) vs f32 reference: small numerical slack.
    assert jnp.allclose(out, ref, atol=1e-2, rtol=1e-2), "mismatch vs reference"

    print("KERNEL_OK")
</pallas_src>

<mosaic_0001>
module attributes {stable_mosaic.version = 11 : i64} {
  func.func @cnn_kernel(%arg0: i32, %arg1: memref<8x16xi32, #tpu.memory_space<vmem>>, %arg2: memref<128x32xbf16, #tpu.memory_space<vmem>>, %arg3: memref<96x64xbf16, #tpu.memory_space<vmem>>, %arg4: memref<1x64xf32, #tpu.memory_space<vmem>>, %arg5: memref<64x8xbf16, #tpu.memory_space<vmem>>, %arg6: memref<1x8xf32, #tpu.memory_space<vmem>>, %arg7: memref<8x8xf32, #tpu.memory_space<vmem>>) attributes {dimension_semantics = [#tpu.dimension_semantics<parallel>], iteration_bounds = array<i64: 1>, scalar_prefetch = 0 : i64, scratch_operands = 0 : i64, tpu.core_type = #tpu.core_type<tc>, window_params = [{transform_indices = @transform_0, window_bounds = array<i64: 8, 16>}, {pipeline_mode = #tpu.pipeline_mode<synchronous>, transform_indices = @transform_1, window_bounds = array<i64: 128, 32>}, {pipeline_mode = #tpu.pipeline_mode<synchronous>, transform_indices = @transform_2, window_bounds = array<i64: 96, 64>}, {pipeline_mode = #tpu.pipeline_mode<synchronous>, transform_indices = @transform_3, window_bounds = array<i64: 1, 64>}, {pipeline_mode = #tpu.pipeline_mode<synchronous>, transform_indices = @transform_4, window_bounds = array<i64: 64, 8>}, {pipeline_mode = #tpu.pipeline_mode<synchronous>, transform_indices = @transform_5, window_bounds = array<i64: 1, 8>}, {transform_indices = @transform_6, window_bounds = array<i64: 8, 8>}]} {
    %0 = tpu.iota {dimensions = array<i32: 1>} : vector<1x16x1xi32>
    %c14_i32 = arith.constant 14 : i32
    %1 = vector.broadcast %c14_i32 : i32 to vector<1x16x1xi32>
    %2 = arith.cmpi slt, %0, %1 : vector<1x16x1xi32>
    %c0_i32 = arith.constant 0 : i32
    %c8_i32 = arith.constant 8 : i32
    %3 = arith.muli %c0_i32, %c8_i32 : i32
    %4 = tpu.assume_multiple %3, 8 : i32
    %5 = arith.index_cast %4 : i32 to index
    %c0 = arith.constant 0 : index
    %6 = vector.load %arg1[%5, %c0] : memref<8x16xi32, #tpu.memory_space<vmem>>, vector<8x16xi32>
    %7 = vector.shape_cast %6 : vector<8x16xi32> to vector<8x16x1xi32>
    %8 = tpu.iota {dimensions = array<i32: 2>} : vector<1x1x128xi32>
    %9 = vector.broadcast %7 : vector<8x16x1xi32> to vector<8x16x128xi32>
    %10 = vector.broadcast %8 : vector<1x1x128xi32> to vector<8x16x128xi32>
    %11 = arith.cmpi eq, %9, %10 : vector<8x16x128xi32>
    %12 = arith.extui %11 : vector<8x16x128xi1> to vector<8x16x128xi32>
    %13 = arith.sitofp %12 : vector<8x16x128xi32> to vector<8x16x128xf32>
    %14 = arith.truncf %13 : vector<8x16x128xf32> to vector<8x16x128xbf16>
    %15 = vector.shape_cast %14 : vector<8x16x128xbf16> to vector<128x128xbf16>
    %c0_0 = arith.constant 0 : index
    %c0_1 = arith.constant 0 : index
    %16 = vector.load %arg2[%c0_0, %c0_1] : memref<128x32xbf16, #tpu.memory_space<vmem>>, vector<128x32xbf16>
    %cst = arith.constant dense<0.000000e+00> : vector<128x32xf32>
    %17 = tpu.matmul %15, %16, %cst {dimension_numbers = #tpu.dot_dimension_numbers<[1], [0], [0], [1], [0, 0, 1, 1], [], []>} : vector<128x128xbf16>, vector<128x32xbf16>, vector<128x32xf32> -> vector<128x32xf32>
    %c127_i32 = arith.constant 127 : i32
    %18 = tpu.dynamic_rotate %17 by %c127_i32 dim 0 : vector<128x32xf32>, i32 -> vector<128x32xf32>
    %c126_i32 = arith.constant 126 : i32
    %19 = tpu.dynamic_rotate %17 by %c126_i32 dim 0 : vector<128x32xf32>, i32 -> vector<128x32xf32>
    %20 = tpu.concatenate %17, %18, %19 in 1 : vector<128x32xf32>, vector<128x32xf32>, vector<128x32xf32> -> vector<128x96xf32>
    %21 = arith.truncf %20 : vector<128x96xf32> to vector<128x96xbf16>
    %c0_2 = arith.constant 0 : index
    %c0_3 = arith.constant 0 : index
    %22 = vector.load %arg3[%c0_2, %c0_3] : memref<96x64xbf16, #tpu.memory_space<vmem>>, vector<96x64xbf16>
    %cst_4 = arith.constant dense<0.000000e+00> : vector<128x64xf32>
    %23 = tpu.matmul %21, %22, %cst_4 {dimension_numbers = #tpu.dot_dimension_numbers<[1], [0], [0], [1], [0, 0, 1, 1], [], []>} : vector<128x96xbf16>, vector<96x64xbf16>, vector<128x64xf32> -> vector<128x64xf32>
    %24 = vector.shape_cast %23 : vector<128x64xf32> to vector<8x16x64xf32>
    %cst_5 = arith.constant -3.40282347E+38 : f32
    %25 = vector.shape_cast %2 : vector<1x16x1xi1> to vector<1x16x1xi1>
    %26 = vector.broadcast %25 : vector<1x16x1xi1> to vector<8x16x64xi1>
    %27 = vector.broadcast %cst_5 : f32 to vector<8x16x64xf32>
    %28 = arith.select %26, %24, %27 : vector<8x16x64xi1>, vector<8x16x64xf32>
    %cst_6 = arith.constant dense<0xFF800000> : vector<8x64xf32>
    %29 = vector.multi_reduction <maximumf>, %28, %cst_6 [1] : vector<8x16x64xf32> to vector<8x64xf32>
    %c0_7 = arith.constant 0 : index
    %c0_8 = arith.constant 0 : index
    %30 = vector.load %arg4[%c0_7, %c0_8] : memref<1x64xf32, #tpu.memory_space<vmem>>, vector<1x64xf32>
    %31 = vector.broadcast %30 : vector<1x64xf32> to vector<8x64xf32>
    %32 = arith.addf %29, %31 : vector<8x64xf32>
    %cst_9 = arith.constant 0.000000e+00 : f32
    %33 = vector.broadcast %cst_9 : f32 to vector<8x64xf32>
    %34 = arith.maximumf %32, %33 : vector<8x64xf32>
    %35 = arith.truncf %34 : vector<8x64xf32> to vector<8x64xbf16>
    %c0_10 = arith.constant 0 : index
    %c0_11 = arith.constant 0 : index
    %36 = vector.load %arg5[%c0_10, %c0_11] : memref<64x8xbf16, #tpu.memory_space<vmem>>, vector<64x8xbf16>
    %cst_12 = arith.constant dense<0.000000e+00> : vector<8x8xf32>
    %37 = tpu.matmul %35, %36, %cst_12 {dimension_numbers = #tpu.dot_dimension_numbers<[1], [0], [0], [1], [0, 0, 1, 1], [], []>} : vector<8x64xbf16>, vector<64x8xbf16>, vector<8x8xf32> -> vector<8x8xf32>
    %c0_13 = arith.constant 0 : index
    %c0_14 = arith.constant 0 : index
    %38 = vector.load %arg6[%c0_13, %c0_14] : memref<1x8xf32, #tpu.memory_space<vmem>>, vector<1x8xf32>
    %39 = vector.broadcast %38 : vector<1x8xf32> to vector<8x8xf32>
    %40 = arith.addf %37, %39 : vector<8x8xf32>
    %41 = arith.index_cast %4 : i32 to index
    %c0_15 = arith.constant 0 : index
    %42 = vector.load %arg7[%41, %c0_15] : memref<8x8xf32, #tpu.memory_space<vmem>>, vector<8x8xf32>
    tpu.vector_store %arg7[%41, %c0_15], %40 {strides = array<i32>} : memref<8x8xf32, #tpu.memory_space<vmem>>, vector<8x8xf32>,
    %c1_i32 = arith.constant 1 : i32
    return
  }
  func.func @transform_0(%arg0: i32) -> (i32, i32) {
    %c0_i32 = arith.constant 0 : i32
    %c0_i32_0 = arith.constant 0 : i32
    return %arg0, %c0_i32 : i32, i32
  }
  func.func @transform_1(%arg0: i32) -> (i32, i32) {
    %c0_i32 = arith.constant 0 : i32
    %c0_i32_0 = arith.constant 0 : i32
    %c0_i32_1 = arith.constant 0 : i32
    return %c0_i32, %c0_i32_0 : i32, i32
  }
  func.func @transform_2(%arg0: i32) -> (i32, i32) {
    %c0_i32 = arith.constant 0 : i32
    %c0_i32_0 = arith.constant 0 : i32
    %c0_i32_1 = arith.constant 0 : i32
    return %c0_i32, %c0_i32_0 : i32, i32
  }
  func.func @transform_3(%arg0: i32) -> (i32, i32) {
    %c0_i32 = arith.constant 0 : i32
    %c0_i32_0 = arith.constant 0 : i32
    %c0_i32_1 = arith.constant 0 : i32
    return %c0_i32, %c0_i32_0 : i32, i32
  }
  func.func @transform_4(%arg0: i32) -> (i32, i32) {
    %c0_i32 = arith.constant 0 : i32
    %c0_i32_0 = arith.constant 0 : i32
    %c0_i32_1 = arith.constant 0 : i32
    return %c0_i32, %c0_i32_0 : i32, i32
  }
  func.func @transform_5(%arg0: i32) -> (i32, i32) {
    %c0_i32 = arith.constant 0 : i32
    %c0_i32_0 = arith.constant 0 : i32
    %c0_i32_1 = arith.constant 0 : i32
    return %c0_i32, %c0_i32_0 : i32, i32
  }
  func.func @transform_6(%arg0: i32) -> (i32, i32) {
    %c0_i32 = arith.constant 0 : i32
    %c0_i32_0 = arith.constant 0 : i32
    return %arg0, %c0_i32 : i32, i32
  }
}

</mosaic_0001>

<llo_original>
// kernel: tpu_custom_call.1
$region0: #{tpu_custom_call.1}
  #allocation0 [shape = 'u32[]', space=smem, size = 0x4, offset = 0x4, fixed_abs, tag = 'smem constant byte address 0x4 - core index']
  #allocation1 [shape = 'u32[144,128]{1,0:T(1,128)}', space=vmem, size = 0x12000, scoped, tag = 'internal scratch']
  %s0 = inlined_call_operand.vmem [shape: s32[8,16], index: 0, kind: input, shape index: {}]
  %s1 = inlined_call_operand.vmem [shape: bf16[128,32], index: 1, kind: input, shape index: {}]
  %s2 = inlined_call_operand.vmem [shape: bf16[96,64], index: 2, kind: input, shape index: {}]
  %s3 = inlined_call_operand.vmem [shape: f32[1,64], index: 3, kind: input, shape index: {}]
  %s4 = inlined_call_operand.vmem [shape: bf16[64,8], index: 4, kind: input, shape index: {}]
  %s5 = inlined_call_operand.vmem [shape: f32[1,8], index: 5, kind: input, shape index: {}]
  %s6 = inlined_call_operand.hbm [shape: f32[8,8], index: 6, kind: output, shape index: {}]
  %s7 = sld [smem:[#allocation0]]
  $region34: #{tpu_custom_call.1} parent=0
    _
  %s9 = ssub.s32 1, %s7
  %s10 = scalar_select 0, %s9, %s7
  $region1: #{tpu_custom_call.1} parent=0
    #allocation2 [shape = 'u8[4096]{0}', space=vmem, size = 0x1000, scoped, tag = 'output window, operand 0, single buffered']
    #allocation3 [shape = 's32[1]{0}', space=sflag, size = 0x4, scoped, tag = 'scoped memory for tpu_custom_call.1']
    %11 = vsyncpa [#allocation3], 0
    // Predicated region
    $region2: #{tpu_custom_call.1} parent=1 // pred_check
      _
    $region3: #{tpu_custom_call.1} parent=1 // pred_check_branch
      %13 = sbr.rel (0) target = $region5
    $region4: #{tpu_custom_call.1} parent=1 // pred_region
      _
    $region5: #{tpu_custom_call.1} parent=1 // pred_fallthru
      _
    // Predicated region
    $region6: #{tpu_custom_call.1} parent=1 // pred_check
      _
    $region7: #{tpu_custom_call.1} parent=1 // pred_check_branch
      %15 = sbr.rel (0) target = $region9
    $region8: #{tpu_custom_call.1} parent=1 // pred_region
      _
    $region9: #{tpu_custom_call.1} parent=1 // pred_fallthru
      _
    // Predicated region
    $region10: #{tpu_custom_call.1} parent=1 // pred_check
      _
    $region11: #{tpu_custom_call.1} parent=1 // pred_check_branch
      %17 = sbr.rel (0) target = $region13
    $region12: #{tpu_custom_call.1} parent=1 // pred_region
      _
    $region13: #{tpu_custom_call.1} parent=1 // pred_fallthru
      _
    // Predicated region
    $region14: #{tpu_custom_call.1} parent=1 // pred_check
      _
    $region15: #{tpu_custom_call.1} parent=1 // pred_check_branch
      %19 = sbr.rel (0) target = $region17
    $region16: #{tpu_custom_call.1} parent=1 // pred_region
      _
    $region17: #{tpu_custom_call.1} parent=1 // pred_fallthru
      _
    // Predicated region
    $region18: #{tpu_custom_call.1} parent=1 // pred_check
      _
    $region19: #{tpu_custom_call.1} parent=1 // pred_check_branch
      %21 = sbr.rel (0) target = $region21
    $region20: #{tpu_custom_call.1} parent=1 // pred_region
      _
    $region21: #{tpu_custom_call.1} parent=1 // pred_fallthru
      _
    // Predicated region
    $region22: #{tpu_custom_call.1} parent=1 // pred_check
      _
    $region23: #{tpu_custom_call.1} parent=1 // pred_check_branch
      %23 = sbr.rel (0) target = $region25
    $region24: #{tpu_custom_call.1} parent=1 // pred_region
      _
    $region25: #{tpu_custom_call.1} parent=1 // pred_fallthru
      _
    %v25 = vlaneseq
    %v26 = vshrl.u32 %v25, 7
    %v27 = vadd.s32 %v26, 8
    %vm28 = vcmp.lt.s32.totalorder %v26, 14
    %vm29 = vcmp.lt.s32.totalorder %v27, 14
    %v30 = vld [vmem:[%s0] sm:$0xff]
    %v31 = vlaneseq
    %v32 = vshrl.u32 %v31, 7
    %v33 = vsub.s32 0, %v32
    %v34 = vrot.slane %v30, %v33
    %36 = vbcast.lane.b32.xlu0 %v34, 256
    %v37 = vpop.permute.xlu0 %36
    %s39 = sor.u32 256, 8
    %40 = vbcast.lane.b32.xlu0 %v34, %s39
    %v41 = vpop.permute.xlu0 %40
    %v42 = vlaneseq
    %v43 = vshrl.u32 %v42, 7
    %v44 = vsub.s32 1, %v43
    %v45 = vrot.slane %v30, %v44
    %47 = vbcast.lane.b32.xlu0 %v45, 256
    %v48 = vpop.permute.xlu0 %47
    %s50 = sor.u32 256, 8
    %51 = vbcast.lane.b32.xlu0 %v45, %s50
    %v52 = vpop.permute.xlu0 %51
    %v53 = vlaneseq
    %v54 = vshrl.u32 %v53, 7
    %v55 = vsub.s32 2, %v54
    %v56 = vrot.slane %v30, %v55
    %58 = vbcast.lane.b32.xlu0 %v56, 256
    %v59 = vpop.permute.xlu0 %58
    %s61 = sor.u32 256, 8
    %62 = vbcast.lane.b32.xlu0 %v56, %s61
    %v63 = vpop.permute.xlu0 %62
    %v64 = vlaneseq
    %v65 = vshrl.u32 %v64, 7
    %v66 = vsub.s32 3, %v65
    %v67 = vrot.slane %v30, %v66
    %69 = vbcast.lane.b32.xlu0 %v67, 256
    %v70 = vpop.permute.xlu0 %69
    %s72 = sor.u32 256, 8
    %73 = vbcast.lane.b32.xlu0 %v67, %s72
    %v74 = vpop.permute.xlu0 %73
    %v75 = vlaneseq
    %v76 = vshrl.u32 %v75, 7
    %v77 = vsub.s32 4, %v76
    %v78 = vrot.slane %v30, %v77
    %80 = vbcast.lane.b32.xlu0 %v78, 256
    %v81 = vpop.permute.xlu0 %80
    %s83 = sor.u32 256, 8
    %84 = vbcast.lane.b32.xlu0 %v78, %s83
    %v85 = vpop.permute.xlu0 %84
    %v86 = vlaneseq
    %v87 = vshrl.u32 %v86, 7
    %v88 = vsub.s32 5, %v87
    %v89 = vrot.slane %v30, %v88
    %91 = vbcast.lane.b32.xlu0 %v89, 256
    %v92 = vpop.permute.xlu0 %91
    %s94 = sor.u32 256, 8
    %95 = vbcast.lane.b32.xlu0 %v89, %s94
    %v96 = vpop.permute.xlu0 %95
    %v97 = vlaneseq
    %v98 = vshrl.u32 %v97, 7
    %v99 = vsub.s32 6, %v98
    %v100 = vrot.slane %v30, %v99
    %102 = vbcast.lane.b32.xlu0 %v100, 256
    %v103 = vpop.permute.xlu0 %102
    %s105 = sor.u32 256, 8
    %106 = vbcast.lane.b32.xlu0 %v100, %s105
    %v107 = vpop.permute.xlu0 %106
    %v108 = vlaneseq
    %v109 = vshrl.u32 %v108, 7
    %v110 = vsub.s32 7, %v109
    %v111 = vrot.slane %v30, %v110
    %113 = vbcast.lane.b32.xlu0 %v111, 256
    %v114 = vpop.permute.xlu0 %113
    %s116 = sor.u32 256, 8
    %117 = vbcast.lane.b32.xlu0 %v111, %s116
    %v118 = vpop.permute.xlu0 %117
    %v119 = vlaneseq
    %v120 = vand.u32 %v119, 127
    %vm121 = vcmp.eq.s32.totalorder %v37, %v120
    %vm122 = vcmp.eq.s32.totalorder %v41, %v120
    %vm123 = vcmp.eq.s32.totalorder %v48, %v120
    %vm124 = vcmp.eq.s32.totalorder %v52, %v120
    %vm125 = vcmp.eq.s32.totalorder %v59, %v120
    %vm126 = vcmp.eq.s32.totalorder %v63, %v120
    %vm127 = vcmp.eq.s32.totalorder %v70, %v120
    %vm128 = vcmp.eq.s32.totalorder %v74, %v120
    %vm129 = vcmp.eq.s32.totalorder %v81, %v120
    %vm130 = vcmp.eq.s32.totalorder %v85, %v120
    %vm131 = vcmp.eq.s32.totalorder %v92, %v120
    %vm132 = vcmp.eq.s32.totalorder %v96, %v120
    %vm133 = vcmp.eq.s32.totalorder %v103, %v120
    %vm134 = vcmp.eq.s32.totalorder %v107, %v120
    %vm135 = vcmp.eq.s32.totalorder %v114, %v120
    %vm136 = vcmp.eq.s32.totalorder %v118, %v120
    %v137 = vsel %vm121, 1, 0
    %v138 = vsel %vm122, 1, 0
    %v139 = vsel %vm123, 1, 0
    %v140 = vsel %vm124, 1, 0
    %v141 = vsel %vm125, 1, 0
    %v142 = vsel %vm126, 1, 0
    %v143 = vsel %vm127, 1, 0
    %v144 = vsel %vm128, 1, 0
    %v145 = vsel %vm129, 1, 0
    %v146 = vsel %vm130, 1, 0
    %v147 = vsel %vm131, 1, 0
    %v148 = vsel %vm132, 1, 0
    %v149 = vsel %vm133, 1, 0
    %v150 = vsel %vm134, 1, 0
    %v151 = vsel %vm135, 1, 0
    %v152 = vsel %vm136, 1, 0
    %v153 = vcvt.s32.f32 %v137
    %v154 = vcvt.s32.f32 %v138
    %v155 = vcvt.s32.f32 %v139
    %v156 = vcvt.s32.f32 %v140
    %v157 = vcvt.s32.f32 %v141
    %v158 = vcvt.s32.f32 %v142
    %v159 = vcvt.s32.f32 %v143
    %v160 = vcvt.s32.f32 %v144
    %v161 = vcvt.s32.f32 %v145
    %v162 = vcvt.s32.f32 %v146
    %v163 = vcvt.s32.f32 %v147
    %v164 = vcvt.s32.f32 %v148
    %v165 = vcvt.s32.f32 %v149
    %v166 = vcvt.s32.f32 %v150
    %v167 = vcvt.s32.f32 %v151
    %v168 = vcvt.s32.f32 %v152
    %v169 = vpack.c.bf16 %v154, %v153
    %v170 = vpack.c.bf16 %v156, %v155
    %v171 = vpack.c.bf16 %v158, %v157
    %v172 = vpack.c.bf16 %v160, %v159
    %v173 = vpack.c.bf16 %v162, %v161
    %v174 = vpack.c.bf16 %v164, %v163
    %v175 = vpack.c.bf16 %v166, %v165
    %v176 = vpack.c.bf16 %v168, %v167
    %v177 = vld [vmem:[%s1] sm:$0xf]
    %v178 = vld [vmem:[%s1 + $0x4] sm:$0xf]
    %v179 = vld [vmem:[%s1 + $0x8] sm:$0xf]
    %v180 = vld [vmem:[%s1 + $0xc] sm:$0xf]
    %v181 = vld [vmem:[%s1 + $0x10] sm:$0xf]
    %v182 = vld [vmem:[%s1 + $0x14] sm:$0xf]
    %v183 = vld [vmem:[%s1 + $0x18] sm:$0xf]
    %v184 = vld [vmem:[%s1 + $0x1c] sm:$0xf]
    %v185 = vld [vmem:[%s1 + $0x20] sm:$0xf]
    %v186 = vld [vmem:[%s1 + $0x24] sm:$0xf]
    %v187 = vld [vmem:[%s1 + $0x28] sm:$0xf]
    %v188 = vld [vmem:[%s1 + $0x2c] sm:$0xf]
    %v189 = vld [vmem:[%s1 + $0x30] sm:$0xf]
    %v190 = vld [vmem:[%s1 + $0x34] sm:$0xf]
    %v191 = vld [vmem:[%s1 + $0x38] sm:$0xf]
    %v192 = vld [vmem:[%s1 + $0x3c] sm:$0xf]
    %v209 = vunpack.c.l.b16 %v177
    %v210 = vunpack.c.l.b16 %v178
    %v211 = vunpack.c.l.b16 %v179
    %v212 = vunpack.c.l.b16 %v180
    %v213 = vunpack.c.l.b16 %v181
    %v214 = vunpack.c.l.b16 %v182
    %v215 = vunpack.c.l.b16 %v183
    %v216 = vunpack.c.l.b16 %v184
    %v217 = vunpack.c.l.b16 %v185
    %v218 = vunpack.c.l.b16 %v186
    %v219 = vunpack.c.l.b16 %v187
    %v220 = vunpack.c.l.b16 %v188
    %v221 = vunpack.c.l.b16 %v189
    %v222 = vunpack.c.l.b16 %v190
    %v223 = vunpack.c.l.b16 %v191
    %v224 = vunpack.c.l.b16 %v192
    %v225 = vpack.c.b16 %v210, %v209
    %v226 = vpack.c.b16 %v212, %v211
    %v227 = vpack.c.b16 %v214, %v213
    %v228 = vpack.c.b16 %v216, %v215
    %v229 = vpack.c.b16 %v218, %v217
    %v230 = vpack.c.b16 %v220, %v219
    %v231 = vpack.c.b16 %v222, %v221
    %v232 = vpack.c.b16 %v224, %v223
    %241 = vmatprep.subr.bf16.mxu0 0
    %242 = vmatpush1.bf16.msra.mxu0 %v225
    %243 = vmatprep.subr.bf16.mxu0 0
    %244 = vmatpush1.bf16.msra.mxu0 %v226
    %245 = vmatprep.subr.bf16.mxu0 0
    %246 = vmatpush1.bf16.msra.mxu0 %v227
    %247 = vmatprep.subr.bf16.mxu0 0
    %248 = vmatpush1.bf16.msra.mxu0 %v228
    %249 = vmatprep.subr.bf16.mxu0 0
    %250 = vmatpush1.bf16.msra.mxu0 %v229
    %251 = vmatprep.subr.bf16.mxu0 0
    %252 = vmatpush1.bf16.msra.mxu0 %v230
    %253 = vmatprep.subr.bf16.mxu0 0
    %254 = vmatpush1.bf16.msra.mxu0 %v231
    %255 = vmatprep.subr.bf16.mxu0 0
    %256 = vmatpush1.bf16.msra.mxu0 %v232
    %257 = vmatprep.subr.bf16.mxu0 0
    %258 = vmatpush1.bf16.msra.mxu0 0
    %259 = vmatprep.subr.bf16.mxu0 0
    %260 = vmatpush1.bf16.msra.mxu0 0
    %261 = vmatprep.subr.bf16.mxu0 0
    %262 = vmatpush1.bf16.msra.mxu0 0
    %263 = vmatprep.subr.bf16.mxu0 0
    %264 = vmatpush1.bf16.msra.mxu0 0
    %265 = vmatprep.subr.bf16.mxu0 0
    %266 = vmatpush1.bf16.msra.mxu0 0
    %267 = vmatprep.subr.bf16.mxu0 0
    %268 = vmatpush1.bf16.msra.mxu0 0
    %269 = vmatprep.subr.bf16.mxu0 0
    %270 = vmatpush1.bf16.msra.mxu0 0
    %271 = vmatprep.subr.bf16.mxu0 0
    %272 = vmatpush1.bf16.msra.mxu0 0
    %273 = vmatprep.mubr.bf16.mxu0 0
    %274 = vmatmul.mubr.bf16.gmra.mrb[0].mxu0 %v169
    %v275 = vpop.f32.mrb[0].mxu0
    %v276 = vadd.f32 0.0, %v275
    %v277 = vpop.f32.mrb[0].mxu0
    %v278 = vpop.f32.mrb[0].mxu0
    %v279 = vadd.f32 0.0, %v278
    %v280 = vpop.f32.mrb[0].mxu0
    %281 = vmatprep.mubr.bf16.mxu0 0
    %282 = vmatmul.mubr.bf16.gmra.mrb[0].mxu0 %v170
    %v283 = vpop.f32.mrb[0].mxu0
    %v284 = vadd.f32 0.0, %v283
    %v285 = vpop.f32.mrb[0].mxu0
    %v286 = vpop.f32.mrb[0].mxu0
    %v287 = vadd.f32 0.0, %v286
    %v288 = vpop.f32.mrb[0].mxu0
    %289 = vmatprep.mubr.bf16.mxu0 0
    %290 = vmatmul.mubr.bf16.gmra.mrb[0].mxu0 %v171
    %v291 = vpop.f32.mrb[0].mxu0
    %v292 = vadd.f32 0.0, %v291
    %v293 = vpop.f32.mrb[0].mxu0
    %v294 = vpop.f32.mrb[0].mxu0
    %v295 = vadd.f32 0.0, %v294
    %v296 = vpop.f32.mrb[0].mxu0
    %297 = vmatprep.mubr.bf16.mxu0 0
    %298 = vmatmul.mubr.bf16.gmra.mrb[0].mxu0 %v172
    %v299 = vpop.f32.mrb[0].mxu0
    %v300 = vadd.f32 0.0, %v299
    %v301 = vpop.f32.mrb[0].mxu0
    %v302 = vpop.f32.mrb[0].mxu0
    %v303 = vadd.f32 0.0, %v302
    %v304 = vpop.f32.mrb[0].mxu0
    %305 = vmatprep.mubr.bf16.mxu0 0
    %306 = vmatmul.mubr.bf16.gmra.mrb[0].mxu0 %v173
    %v307 = vpop.f32.mrb[0].mxu0
    %v308 = vadd.f32 0.0, %v307
    %v309 = vpop.f32.mrb[0].mxu0
    %v310 = vpop.f32.mrb[0].mxu0
    %v311 = vadd.f32 0.0, %v310
    %v312 = vpop.f32.mrb[0].mxu0
    %313 = vmatprep.mubr.bf16.mxu0 0
    %314 = vmatmul.mubr.bf16.gmra.mrb[0].mxu0 %v174
    %v315 = vpop.f32.mrb[0].mxu0
    %v316 = vadd.f32 0.0, %v315
    %v317 = vpop.f32.mrb[0].mxu0
    %v318 = vpop.f32.mrb[0].mxu0
    %v319 = vadd.f32 0.0, %v318
    %v320 = vpop.f32.mrb[0].mxu0
    %321 = vmatprep.mubr.bf16.mxu0 0
    %322 = vmatmul.mubr.bf16.gmra.mrb[0].mxu0 %v175
    %v323 = vpop.f32.mrb[0].mxu0
    %v324 = vadd.f32 0.0, %v323
    %v325 = vpop.f32.mrb[0].mxu0
    %v326 = vpop.f32.mrb[0].mxu0
    %v327 = vadd.f32 0.0, %v326
    %v328 = vpop.f32.mrb[0].mxu0
    %329 = vmatprep.mubr.bf16.mxu0 0
    %330 = vmatmul.mubr.bf16.gmra.mrb[0].mxu0 %v176
    %v331 = vpop.f32.mrb[0].mxu0
    %v332 = vadd.f32 0.0, %v331
    %v333 = vpop.f32.mrb[0].mxu0
    %v334 = vpop.f32.mrb[0].mxu0
    %v335 = vadd.f32 0.0, %v334
    %v336 = vpop.f32.mrb[0].mxu0
    %337 = vdwg.mxu0
    %v338 = vrot.slane %v276, 1
    %v339 = vrot.slane %v279, 1
    %v340 = vrot.slane %v284, 1
    %v341 = vrot.slane %v287, 1
    %v342 = vrot.slane %v292, 1
    %v343 = vrot.slane %v295, 1
    %v344 = vrot.slane %v300, 1
    %v345 = vrot.slane %v303, 1
    %v346 = vrot.slane %v308, 1
    %v347 = vrot.slane %v311, 1
    %v348 = vrot.slane %v316, 1
    %v349 = vrot.slane %v319, 1
    %v350 = vrot.slane %v324, 1
    %v351 = vrot.slane %v327, 1
    %v352 = vrot.slane %v332, 1
    %v353 = vrot.slane %v335, 1
    %vm354 = vcmp.lt.s32.totalorder %v26, 7
    %v355 = vsel %vm354, %v352, %v353
    %v356 = vsel %vm354, %v351, %v352
    %v357 = vsel %vm354, %v350, %v351
    %v358 = vsel %vm354, %v349, %v350
    %v359 = vsel %vm354, %v348, %v349
    %v360 = vsel %vm354, %v347, %v348
    %v361 = vsel %vm354, %v346, %v347
    %v362 = vsel %vm354, %v345, %v346
    %v363 = vsel %vm354, %v344, %v345
    %v364 = vsel %vm354, %v343, %v344
    %v365 = vsel %vm354, %v342, %v343
    %v366 = vsel %vm354, %v341, %v342
    %v367 = vsel %vm354, %v340, %v341
    %v368 = vsel %vm354, %v339, %v340
    %v369 = vsel %vm354, %v338, %v339
    %v370 = vsel %vm354, %v353, %v338
    %v371 = vrot.slane %v276, 2
    %v372 = vrot.slane %v279, 2
    %v373 = vrot.slane %v284, 2
    %v374 = vrot.slane %v287, 2
    %v375 = vrot.slane %v292, 2
    %v376 = vrot.slane %v295, 2
    %v377 = vrot.slane %v300, 2
    %v378 = vrot.slane %v303, 2
    %v379 = vrot.slane %v308, 2
    %v380 = vrot.slane %v311, 2
    %v381 = vrot.slane %v316, 2
    %v382 = vrot.slane %v319, 2
    %v383 = vrot.slane %v324, 2
    %v384 = vrot.slane %v327, 2
    %v385 = vrot.slane %v332, 2
    %v386 = vrot.slane %v335, 2
    %vm387 = vcmp.lt.s32.totalorder %v26, 6
    %v388 = vsel %vm387, %v385, %v386
    %v389 = vsel %vm387, %v384, %v385
    %v390 = vsel %vm387, %v383, %v384
    %v391 = vsel %vm387, %v382, %v383
    %v392 = vsel %vm387, %v381, %v382
    %v393 = vsel %vm387, %v380, %v381
    %v394 = vsel %vm387, %v379, %v380
    %v395 = vsel %vm387, %v378, %v379
    %v396 = vsel %vm387, %v377, %v378
    %v397 = vsel %vm387, %v376, %v377
    %v398 = vsel %vm387, %v375, %v376
    %v399 = vsel %vm387, %v374, %v375
    %v400 = vsel %vm387, %v373, %v374
    %v401 = vsel %vm387, %v372, %v373
    %v402 = vsel %vm387, %v371, %v372
    %v403 = vsel %vm387, %v386, %v371
    %420 = vrot.lane.b32.xlu0 %v369, 32
    %v421 = vpop.permute.xlu0 %420
    %422 = vrot.lane.b32.xlu0 %v368, 32
    %v423 = vpop.permute.xlu0 %422
    %424 = vrot.lane.b32.xlu0 %v367, 32
    %v425 = vpop.permute.xlu0 %424
    %426 = vrot.lane.b32.xlu0 %v366, 32
    %v427 = vpop.permute.xlu0 %426
    %428 = vrot.lane.b32.xlu0 %v365, 32
    %v429 = vpop.permute.xlu0 %428
    %430 = vrot.lane.b32.xlu0 %v364, 32
    %v431 = vpop.permute.xlu0 %430
    %432 = vrot.lane.b32.xlu0 %v363, 32
    %v433 = vpop.permute.xlu0 %432
    %434 = vrot.lane.b32.xlu0 %v362, 32
    %v435 = vpop.permute.xlu0 %434
    %436 = vrot.lane.b32.xlu0 %v361, 32
    %v437 = vpop.permute.xlu0 %436
    %438 = vrot.lane.b32.xlu0 %v360, 32
    %v439 = vpop.permute.xlu0 %438
    %440 = vrot.lane.b32.xlu0 %v359, 32
    %v441 = vpop.permute.xlu0 %440
    %442 = vrot.lane.b32.xlu0 %v358, 32
    %v443 = vpop.permute.xlu0 %442
    %444 = vrot.lane.b32.xlu0 %v357, 32
    %v445 = vpop.permute.xlu0 %444
    %446 = vrot.lane.b32.xlu0 %v356, 32
    %v447 = vpop.permute.xlu0 %446
    %448 = vrot.lane.b32.xlu0 %v355, 32
    %v449 = vpop.permute.xlu0 %448
    %450 = vrot.lane.b32.xlu0 %v370, 32
    %v451 = vpop.permute.xlu0 %450
    %484 = vrot.lane.b32.xlu0 %v402, 64
    %v485 = vpop.permute.xlu0 %484
    %486 = vrot.lane.b32.xlu0 %v401, 64
    %v487 = vpop.permute.xlu0 %486
    %488 = vrot.lane.b32.xlu0 %v400, 64
    %v489 = vpop.permute.xlu0 %488
    %490 = vrot.lane.b32.xlu0 %v399, 64
    %v491 = vpop.permute.xlu0 %490
    %492 = vrot.lane.b32.xlu0 %v398, 64
    %v493 = vpop.permute.xlu0 %492
    %494 = vrot.lane.b32.xlu0 %v397, 64
    %v495 = vpop.permute.xlu0 %494
    %496 = vrot.lane.b32.xlu0 %v396, 64
    %v497 = vpop.permute.xlu0 %496
    %498 = vrot.lane.b32.xlu0 %v395, 64
    %v499 = vpop.permute.xlu0 %498
    %500 = vrot.lane.b32.xlu0 %v394, 64
    %v501 = vpop.permute.xlu0 %500
    %502 = vrot.lane.b32.xlu0 %v393, 64
    %v503 = vpop.permute.xlu0 %502
    %504 = vrot.lane.b32.xlu0 %v392, 64
    %v505 = vpop.permute.xlu0 %504
    %506 = vrot.lane.b32.xlu0 %v391, 64
    %v507 = vpop.permute.xlu0 %506
    %508 = vrot.lane.b32.xlu0 %v390, 64
    %v509 = vpop.permute.xlu0 %508
    %510 = vrot.lane.b32.xlu0 %v389, 64
    %v511 = vpop.permute.xlu0 %510
    %512 = vrot.lane.b32.xlu0 %v388, 64
    %v513 = vpop.permute.xlu0 %512
    %514 = vrot.lane.b32.xlu0 %v403, 64
    %v515 = vpop.permute.xlu0 %514
    %vm532 = vcmask 261120
    %v533 = vsel %vm532, %v276, %v421
    %v534 = vsel %vm532, %v279, %v423
    %v535 = vsel %vm532, %v284, %v425
    %v536 = vsel %vm532, %v287, %v427
    %v537 = vsel %vm532, %v292, %v429
    %v538 = vsel %vm532, %v295, %v431
    %v539 = vsel %vm532, %v300, %v433
    %v540 = vsel %vm532, %v303, %v435
    %v541 = vsel %vm532, %v308, %v437
    %v542 = vsel %vm532, %v311, %v439
    %v543 = vsel %vm532, %v316, %v441
    %v544 = vsel %vm532, %v319, %v443
    %v545 = vsel %vm532, %v324, %v445
    %v546 = vsel %vm532, %v327, %v447
    %v547 = vsel %vm532, %v332, %v449
    %v548 = vsel %vm532, %v335, %v451
    %vm549 = vcmask 523264
    %v550 = vsel %vm549, %v533, %v485
    %v551 = vsel %vm549, %v534, %v487
    %v552 = vsel %vm549, %v535, %v489
    %v553 = vsel %vm549, %v536, %v491
    %v554 = vsel %vm549, %v537, %v493
    %v555 = vsel %vm549, %v538, %v495
    %v556 = vsel %vm549, %v539, %v497
    %v557 = vsel %vm549, %v540, %v499
    %v558 = vsel %vm549, %v541, %v501
    %v559 = vsel %vm549, %v542, %v503
    %v560 = vsel %vm549, %v543, %v505
    %v561 = vsel %vm549, %v544, %v507
    %v562 = vsel %vm549, %v545, %v509
    %v563 = vsel %vm549, %v546, %v511
    %v564 = vsel %vm549, %v547, %v513
    %v565 = vsel %vm549, %v548, %v515
    %v566 = vpack.c.bf16 %v551, %v550
    %v567 = vpack.c.bf16 %v553, %v552
    %v568 = vpack.c.bf16 %v555, %v554
    %v569 = vpack.c.bf16 %v557, %v556
    %v570 = vpack.c.bf16 %v559, %v558
    %v571 = vpack.c.bf16 %v561, %v560
    %v572 = vpack.c.bf16 %v563, %v562
    %v573 = vpack.c.bf16 %v565, %v564
    %v574 = vld [vmem:[%s2] sm:$0xf]
    %v575 = vld [vmem:[%s2 + $0x4] sm:$0xf]
    %v576 = vld [vmem:[%s2 + $0x8] sm:$0xf]
    %v577 = vld [vmem:[%s2 + $0xc] sm:$0xf]
    %v578 = vld [vmem:[%s2 + $0x10] sm:$0xf]
    %v579 = vld [vmem:[%s2 + $0x14] sm:$0xf]
    %v580 = vld [vmem:[%s2 + $0x18] sm:$0xf]
    %v581 = vld [vmem:[%s2 + $0x1c] sm:$0xf]
    %v582 = vld [vmem:[%s2 + $0x20] sm:$0xf]
    %v583 = vld [vmem:[%s2 + $0x24] sm:$0xf]
    %v584 = vld [vmem:[%s2 + $0x28] sm:$0xf]
    %v585 = vld [vmem:[%s2 + $0x2c] sm:$0xf]
    %v598 = vunpack.c.l.b16 %v574
    %v599 = vunpack.c.l.b16 %v575
    %v600 = vunpack.c.l.b16 %v576
    %v601 = vunpack.c.l.b16 %v577
    %v602 = vunpack.c.l.b16 %v578
    %v603 = vunpack.c.l.b16 %v579
    %v604 = vunpack.c.l.b16 %v580
    %v605 = vunpack.c.l.b16 %v581
    %v606 = vunpack.c.l.b16 %v582
    %v607 = vunpack.c.l.b16 %v583
    %v608 = vunpack.c.l.b16 %v584
    %v609 = vunpack.c.l.b16 %v585
    %v610 = vpack.c.b16 %v599, %v598
    %v611 = vpack.c.b16 %v601, %v600
    %v612 = vpack.c.b16 %v603, %v602
    %v613 = vpack.c.b16 %v605, %v604
    %v614 = vpack.c.b16 %v607, %v606
    %v615 = vpack.c.b16 %v609, %v608
    %vm622 = vcmask 785408
    %v624 = vsel %vm622, %v566, 0
    %v627 = vsel %vm622, %v567, 0
    %v630 = vsel %vm622, %v568, 0
    %v633 = vsel %vm622, %v569, 0
    %v636 = vsel %vm622, %v570, 0
    %v639 = vsel %vm622, %v571, 0
    %v642 = vsel %vm622, %v572, 0
    %v645 = vsel %vm622, %v573, 0
    %647 = vmatprep.subr.bf16.mxu0 0
    %648 = vmatpush1.bf16.msra.mxu0 %v610
    %649 = vmatprep.subr.bf16.mxu0 0
    %650 = vmatpush1.bf16.msra.mxu0 %v611
    %651 = vmatprep.subr.bf16.mxu0 0
    %652 = vmatpush1.bf16.msra.mxu0 %v612
    %653 = vmatprep.subr.bf16.mxu0 0
    %654 = vmatpush1.bf16.msra.mxu0 %v613
    %655 = vmatprep.subr.bf16.mxu0 0
    %656 = vmatpush1.bf16.msra.mxu0 %v614
    %657 = vmatprep.subr.bf16.mxu0 0
    %658 = vmatpush1.bf16.msra.mxu0 %v615
    %659 = vmatprep.subr.bf16.mxu0 0
    %660 = vmatpush1.bf16.msra.mxu0 0
    %661 = vmatprep.subr.bf16.mxu0 0
    %662 = vmatpush1.bf16.msra.mxu0 0
    %663 = vmatprep.subr.bf16.mxu0 0
    %664 = vmatpush1.bf16.msra.mxu0 0
    %665 = vmatprep.subr.bf16.mxu0 0
    %666 = vmatpush1.bf16.msra.mxu0 0
    %667 = vmatprep.subr.bf16.mxu0 0
    %668 = vmatpush1.bf16.msra.mxu0 0
    %669 = vmatprep.subr.bf16.mxu0 0
    %670 = vmatpush1.bf16.msra.mxu0 0
    %671 = vmatprep.subr.bf16.mxu0 0
    %672 = vmatpush1.bf16.msra.mxu0 0
    %673 = vmatprep.subr.bf16.mxu0 0
    %674 = vmatpush1.bf16.msra.mxu0 0
    %675 = vmatprep.subr.bf16.mxu0 0
    %676 = vmatpush1.bf16.msra.mxu0 0
    %677 = vmatprep.subr.bf16.mxu0 0
    %678 = vmatpush1.bf16.msra.mxu0 0
    %679 = vmatprep.mubr.bf16.mxu0 0
    %680 = vmatmul.mubr.bf16.gmra.mrb[0].mxu0 %v624
    %v681 = vpop.f32.mrb[0].mxu0
    %v682 = vadd.f32 0.0, %v681
    %v683 = vpop.f32.mrb[0].mxu0
    %v684 = vpop.f32.mrb[0].mxu0
    %v685 = vadd.f32 0.0, %v684
    %v686 = vpop.f32.mrb[0].mxu0
    %687 = vmatprep.mubr.bf16.mxu0 0
    %688 = vmatmul.mubr.bf16.gmra.mrb[0].mxu0 %v627
    %v689 = vpop.f32.mrb[0].mxu0
    %v690 = vadd.f32 0.0, %v689
    %v691 = vpop.f32.mrb[0].mxu0
    %v692 = vpop.f32.mrb[0].mxu0
    %v693 = vadd.f32 0.0, %v692
    %v694 = vpop.f32.mrb[0].mxu0
    %695 = vmatprep.mubr.bf16.mxu0 0
    %696 = vmatmul.mubr.bf16.gmra.mrb[0].mxu0 %v630
    %v697 = vpop.f32.mrb[0].mxu0
    %v698 = vadd.f32 0.0, %v697
    %v699 = vpop.f32.mrb[0].mxu0
    %v700 = vpop.f32.mrb[0].mxu0
    %v701 = vadd.f32 0.0, %v700
    %v702 = vpop.f32.mrb[0].mxu0
    %703 = vmatprep.mubr.bf16.mxu0 0
    %704 = vmatmul.mubr.bf16.gmra.mrb[0].mxu0 %v633
    %v705 = vpop.f32.mrb[0].mxu0
    %v706 = vadd.f32 0.0, %v705
    %v707 = vpop.f32.mrb[0].mxu0
    %v708 = vpop.f32.mrb[0].mxu0
    %v709 = vadd.f32 0.0, %v708
    %v710 = vpop.f32.mrb[0].mxu0
    %711 = vmatprep.mubr.bf16.mxu0 0
    %712 = vmatmul.mubr.bf16.gmra.mrb[0].mxu0 %v636
    %v713 = vpop.f32.mrb[0].mxu0
    %v714 = vadd.f32 0.0, %v713
    %v715 = vpop.f32.mrb[0].mxu0
    %v716 = vpop.f32.mrb[0].mxu0
    %v717 = vadd.f32 0.0, %v716
    %v718 = vpop.f32.mrb[0].mxu0
    %719 = vmatprep.mubr.bf16.mxu0 0
    %720 = vmatmul.mubr.bf16.gmra.mrb[0].mxu0 %v639
    %v721 = vpop.f32.mrb[0].mxu0
    %v722 = vadd.f32 0.0, %v721
    %v723 = vpop.f32.mrb[0].mxu0
    %v724 = vpop.f32.mrb[0].mxu0
    %v725 = vadd.f32 0.0, %v724
    %v726 = vpop.f32.mrb[0].mxu0
    %727 = vmatprep.mubr.bf16.mxu0 0
    %728 = vmatmul.mubr.bf16.gmra.mrb[0].mxu0 %v642
    %v729 = vpop.f32.mrb[0].mxu0
    %v730 = vadd.f32 0.0, %v729
    %v731 = vpop.f32.mrb[0].mxu0
    %v732 = vpop.f32.mrb[0].mxu0
    %v733 = vadd.f32 0.0, %v732
    %v734 = vpop.f32.mrb[0].mxu0
    %735 = vmatprep.mubr.bf16.mxu0 0
    %736 = vmatmul.mubr.bf16.gmra.mrb[0].mxu0 %v645
    %v737 = vpop.f32.mrb[0].mxu0
    %v738 = vadd.f32 0.0, %v737
    %v739 = vpop.f32.mrb[0].mxu0
    %v740 = vpop.f32.mrb[0].mxu0
    %v741 = vadd.f32 0.0, %v740
    %v742 = vpop.f32.mrb[0].mxu0
    %743 = vdwg.mxu0
    %v744 = vsel %vm28, 1, 0
    %v745 = vsel %vm29, 1, 0
    %vm746 = vcmp.eq.s32.totalorder %v744, 1
    %vm747 = vcmp.eq.s32.totalorder %v745, 1
    %v748 = vsel %vm746, %v682, -3.4028235e+38
    %v749 = vsel %vm747, %v685, -3.4028235e+38
    %v750 = vsel %vm746, %v690, -3.4028235e+38
    %v751 = vsel %vm747, %v693, -3.4028235e+38
    %v752 = vsel %vm746, %v698, -3.4028235e+38
    %v753 = vsel %vm747, %v701, -3.4028235e+38
    %v754 = vsel %vm746, %v706, -3.4028235e+38
    %v755 = vsel %vm747, %v709, -3.4028235e+38
    %v756 = vsel %vm746, %v714, -3.4028235e+38
    %v757 = vsel %vm747, %v717, -3.4028235e+38
    %v758 = vsel %vm746, %v722, -3.4028235e+38
    %v759 = vsel %vm747, %v725, -3.4028235e+38
    %v760 = vsel %vm746, %v730, -3.4028235e+38
    %v761 = vsel %vm747, %v733, -3.4028235e+38
    %v762 = vsel %vm746, %v738, -3.4028235e+38
    %v763 = vsel %vm747, %v741, -3.4028235e+38
    %v764 = vsel %vm549, %v748, -inf
    %v765 = vsel %vm549, %v749, -inf
    %v766 = vmax.f32 %v764, %v765
    %v767 = vrot.slane %v766, 4
    %v768 = vmax.f32 %v766, %v767
    %v769 = vrot.slane %v768, 2
    %v770 = vmax.f32 %v768, %v769
    %v771 = vrot.slane %v770, 1
    %v772 = vmax.f32 %v770, %v771
    %v773 = vsel %vm549, %v750, -inf
    %v774 = vsel %vm549, %v751, -inf
    %v775 = vmax.f32 %v773, %v774
    %v776 = vrot.slane %v775, 4
    %v777 = vmax.f32 %v775, %v776
    %v778 = vrot.slane %v777, 2
    %v779 = vmax.f32 %v777, %v778
    %v780 = vrot.slane %v779, 1
    %v781 = vmax.f32 %v779, %v780
    %v782 = vsel %vm549, %v752, -inf
    %v783 = vsel %vm549, %v753, -inf
    %v784 = vmax.f32 %v782, %v783
    %v785 = vrot.slane %v784, 4
    %v786 = vmax.f32 %v784, %v785
    %v787 = vrot.slane %v786, 2
    %v788 = vmax.f32 %v786, %v787
    %v789 = vrot.slane %v788, 1
    %v790 = vmax.f32 %v788, %v789
    %v791 = vsel %vm549, %v754, -inf
    %v792 = vsel %vm549, %v755, -inf
    %v793 = vmax.f32 %v791, %v792
    %v794 = vrot.slane %v793, 4
    %v795 = vmax.f32 %v793, %v794
    %v796 = vrot.slane %v795, 2
    %v797 = vmax.f32 %v795, %v796
    %v798 = vrot.slane %v797, 1
    %v799 = vmax.f32 %v797, %v798
    %v800 = vsel %vm549, %v756, -inf
    %v801 = vsel %vm549, %v757, -inf
    %v802 = vmax.f32 %v800, %v801
    %v803 = vrot.slane %v802, 4
    %v804 = vmax.f32 %v802, %v803
    %v805 = vrot.slane %v804, 2
    %v806 = vmax.f32 %v804, %v805
    %v807 = vrot.slane %v806, 1
    %v808 = vmax.f32 %v806, %v807
    %v809 = vsel %vm549, %v758, -inf
    %v810 = vsel %vm549, %v759, -inf
    %v811 = vmax.f32 %v809, %v810
    %v812 = vrot.slane %v811, 4
    %v813 = vmax.f32 %v811, %v812
    %v814 = vrot.slane %v813, 2
    %v815 = vmax.f32 %v813, %v814
    %v816 = vrot.slane %v815, 1
    %v817 = vmax.f32 %v815, %v816
    %v818 = vsel %vm549, %v760, -inf
    %v819 = vsel %vm549, %v761, -inf
    %v820 = vmax.f32 %v818, %v819
    %v821 = vrot.slane %v820, 4
    %v822 = vmax.f32 %v820, %v821
    %v823 = vrot.slane %v822, 2
    %v824 = vmax.f32 %v822, %v823
    %v825 = vrot.slane %v824, 1
    %v826 = vmax.f32 %v824, %v825
    %v827 = vsel %vm549, %v762, -inf
    %v828 = vsel %vm549, %v763, -inf
    %v829 = vmax.f32 %v827, %v828
    %v830 = vrot.slane %v829, 4
    %v831 = vmax.f32 %v829, %v830
    %v832 = vrot.slane %v831, 2
    %v833 = vmax.f32 %v831, %v832
    %v834 = vrot.slane %v833, 1
    %v835 = vmax.f32 %v833, %v834
    %v836 = vld [vmem:[%s3] sm:$0x1]
    %v838 = vlaneseq
    %v839 = vshrl.u32 %v838, 7
    %v840 = vsub.s32 0, %v839
    %v841 = vrot.slane %v836, %v840
    %v843 = vadd.f32 %v772, %v841
    %v844 = vadd.f32 %v781, %v841
    %v845 = vadd.f32 %v790, %v841
    %v846 = vadd.f32 %v799, %v841
    %v847 = vadd.f32 %v808, %v841
    %v848 = vadd.f32 %v817, %v841
    %v849 = vadd.f32 %v826, %v841
    %v850 = vadd.f32 %v835, %v841
    %v851 = vmax.f32 %v843, 0.0
    %v852 = vmax.f32 %v844, 0.0
    %v853 = vmax.f32 %v845, 0.0
    %v854 = vmax.f32 %v846, 0.0
    %v855 = vmax.f32 %v847, 0.0
    %v856 = vmax.f32 %v848, 0.0
    %v857 = vmax.f32 %v849, 0.0
    %v858 = vmax.f32 %v850, 0.0
    %v859 = vpack.c.bf16 %v851, %v851
    %v860 = vpack.c.bf16 %v852, %v852
    %v861 = vpack.c.bf16 %v853, %v853
    %v862 = vpack.c.bf16 %v854, %v854
    %v863 = vpack.c.bf16 %v855, %v855
    %v864 = vpack.c.bf16 %v856, %v856
    %v865 = vpack.c.bf16 %v857, %v857
    %v866 = vpack.c.bf16 %v858, %v858
    %v867 = vld [vmem:[%s4] sm:$0xf]
    %v868 = vld [vmem:[%s4 + $0x4] sm:$0xf]
    %v869 = vld [vmem:[%s4 + $0x8] sm:$0xf]
    %v870 = vld [vmem:[%s4 + $0xc] sm:$0xf]
    %v871 = vld [vmem:[%s4 + $0x10] sm:$0xf]
    %v872 = vld [vmem:[%s4 + $0x14] sm:$0xf]
    %v873 = vld [vmem:[%s4 + $0x18] sm:$0xf]
    %v874 = vld [vmem:[%s4 + $0x1c] sm:$0xf]
    %v875 = vld [vmem:[%s5] sm:$0x1]
    %v877 = vlaneseq
    %v878 = vshrl.u32 %v877, 7
    %v879 = vsub.s32 0, %v878
    %v880 = vrot.slane %v875, %v879
    %v890 = vunpack.c.l.b16 %v859
    %v891 = vunpack.c.l.b16 %v860
    %v892 = vunpack.c.l.b16 %v861
    %v893 = vunpack.c.l.b16 %v862
    %v894 = vunpack.c.l.b16 %v863
    %v895 = vunpack.c.l.b16 %v864
    %v896 = vunpack.c.l.b16 %v865
    %v897 = vunpack.c.l.b16 %v866
    %v898 = vrot.slane %v891, 7
    %vm899 = vcmask 1041409
    %v900 = vsel %vm899, %v898, %v890
    %v901 = vrot.slane %v892, 6
    %vm902 = vcmask 1042434
    %v903 = vsel %vm902, %v901, %v900
    %v904 = vrot.slane %v893, 5
    %vm905 = vcmask 1043459
    %v906 = vsel %vm905, %v904, %v903
    %v907 = vrot.slane %v894, 4
    %vm908 = vcmask 1044484
    %v909 = vsel %vm908, %v907, %v906
    %v910 = vrot.slane %v895, 3
    %vm911 = vcmask 1045509
    %v912 = vsel %vm911, %v910, %v909
    %v913 = vrot.slane %v896, 2
    %vm914 = vcmask 1046534
    %v915 = vsel %vm914, %v913, %v912
    %v916 = vrot.slane %v897, 1
    %vm917 = vcmask 1047559
    %v918 = vsel %vm917, %v916, %v915
    %v919 = vpack.c.b16 %v918, %v918
    %v928 = vunpack.c.l.b16 %v867
    %v929 = vunpack.c.l.b16 %v868
    %v930 = vunpack.c.l.b16 %v869
    %v931 = vunpack.c.l.b16 %v870
    %v932 = vunpack.c.l.b16 %v871
    %v933 = vunpack.c.l.b16 %v872
    %v934 = vunpack.c.l.b16 %v873
    %v935 = vunpack.c.l.b16 %v874
    %v936 = vpack.c.b16 %v929, %v928
    %v937 = vpack.c.b16 %v931, %v930
    %v938 = vpack.c.b16 %v933, %v932
    %v939 = vpack.c.b16 %v935, %v934
    %v945 = vsel %vm549, %v919, 0
    %947 = vmatprep.subr.bf16.mxu0 0
    %948 = vmatpush1.bf16.msra.mxu0 %v936
    %949 = vmatprep.subr.bf16.mxu0 0
    %950 = vmatpush1.bf16.msra.mxu0 %v937
    %951 = vmatprep.subr.bf16.mxu0 0
    %952 = vmatpush1.bf16.msra.mxu0 %v938
    %953 = vmatprep.subr.bf16.mxu0 0
    %954 = vmatpush1.bf16.msra.mxu0 %v939
    %955 = vmatprep.subr.bf16.mxu0 0
    %956 = vmatpush1.bf16.msra.mxu0 0
    %957 = vmatprep.subr.bf16.mxu0 0
    %958 = vmatpush1.bf16.msra.mxu0 0
    %959 = vmatprep.subr.bf16.mxu0 0
    %960 = vmatpush1.bf16.msra.mxu0 0
    %961 = vmatprep.subr.bf16.mxu0 0
    %962 = vmatpush1.bf16.msra.mxu0 0
    %963 = vmatprep.subr.bf16.mxu0 0
    %964 = vmatpush1.bf16.msra.mxu0 0
    %965 = vmatprep.subr.bf16.mxu0 0
    %966 = vmatpush1.bf16.msra.mxu0 0
    %967 = vmatprep.subr.bf16.mxu0 0
    %968 = vmatpush1.bf16.msra.mxu0 0
    %969 = vmatprep.subr.bf16.mxu0 0
    %970 = vmatpush1.bf16.msra.mxu0 0
    %971 = vmatprep.subr.bf16.mxu0 0
    %972 = vmatpush1.bf16.msra.mxu0 0
    %973 = vmatprep.subr.bf16.mxu0 0
    %974 = vmatpush1.bf16.msra.mxu0 0
    %975 = vmatprep.subr.bf16.mxu0 0
    %976 = vmatpush1.bf16.msra.mxu0 0
    %977 = vmatprep.subr.bf16.mxu0 0
    %978 = vmatpush1.bf16.msra.mxu0 0
    %979 = vmatprep.mubr.bf16.mxu0 0
    %980 = vmatmul.mubr.bf16.gmra.mrb[0].mxu0 %v945
    %v981 = vpop.f32.mrb[0].mxu0
    %v982 = vadd.f32 %v880, %v981
    %v983 = vpop.f32.mrb[0].mxu0
    %v984 = vpop.f32.mrb[0].mxu0
    %v985 = vpop.f32.mrb[0].mxu0
    %986 = vdwg.mxu0
    %vm987 = vcmask 64512
    %988 = vst.msk [vmem:[#allocation2] sm:$0xff] %vm987, %v982
    // Predicated region
    $region26: #{tpu_custom_call.1} parent=1 // pred_check
      _
    $region27: #{tpu_custom_call.1} parent=1 // pred_check_branch
      %990 = sbr.rel (0) target = $region29
    $region28: #{tpu_custom_call.1} parent=1 // pred_region
      %s992 = ssub.s32 128, 128
      %993 = vsyncadd [#allocation3], %s992
      %s995 = sshll.u32 [#allocation2], 4
      %s996 = int_to_ptr.vmem [resolvable:$true] %s995
      %998 = dma.vmem_to_hbm [thread:$0]  %s996, 128, %s6, [#allocation3]
    $region29: #{tpu_custom_call.1} parent=1 // pred_fallthru
      _
    // Predicated region
    $region30: #{tpu_custom_call.1} parent=1 // pred_check
      _
    $region31: #{tpu_custom_call.1} parent=1 // pred_check_branch
      %1000 = sbr.rel (0) target = $region33
    $region32: #{tpu_custom_call.1} parent=1 // pred_region
      %1001 = dma.done [#allocation3], 128
    $region33: #{tpu_custom_call.1} parent=1 // pred_fallthru
      _
    %1002 = vsyncpa [#allocation3], 1

</llo_original>
